<compile_context>
chip_gen: v5e
topology: v5e:2x2
jax: 0.10.0
libtpu: 0.0.40
codegen_flags: <defaults>
</compile_context>

<pallas_src>
import jax
import jax.numpy as jnp
from jax.experimental import pallas as pl
from jax.experimental.pallas import tpu as pltpu


def simple_nn_kernel(x_ref, w1e_ref, b1_ref, w2_ref, b2_ref, out_ref):
    # x_ref  : (TB, D)     input tile
    # w1e_ref: (D, D*H)    kron(I_D, w1)  -- fc1 folded into one MXU matmul
    # b1_ref : (1, D*H)    fc1 bias tiled along the flat (d*H + h) axis
    # w2_ref : (D*H, 1)    fc2 weight as a column
    # b2_ref : (1, 1)      fc2 bias (SMEM scalar)
    # out_ref: (TB, 1)     output tile
    x = x_ref[...]                                                      # (TB, D)

    # fc1 for every scalar element, as a single MXU matmul:
    #   (x @ w1e)[b, d*H + h] == x[b, d] * w1[h]
    h = jnp.dot(x, w1e_ref[...], preferred_element_type=jnp.float32)    # (TB, D*H)

    # Bias + ReLU on a lane-dense (TB, D*H) slab (VPU).
    a = jnp.maximum(h + b1_ref[...], 0.0)                               # (TB, D*H)

    # fc2: flattened contraction on the MXU.
    out = jnp.dot(a, w2_ref[...], preferred_element_type=jnp.float32)   # (TB, 1)

    out_ref[...] = out + b2_ref[0, 0]


def simple_nn_forward(x, w1, b1, w2, b2, *, block_b=128):
    B, D = x.shape
    H = w1.shape[1]
    DH = D * H
    TB = block_b

    # Pad the batch up to a multiple of the tile size (pad rows are discarded below).
    num_tiles = pl.cdiv(B, TB)
    B_pad = num_tiles * TB
    x_p = jnp.pad(x, ((0, B_pad - B), (0, 0))) if B_pad != B else x

    # Fold fc1's (1 -> H) weight into a (D, D*H) expansion matrix so fc1 becomes one MXU
    # matmul producing a lane-dense (TB, D*H) activation (preserves torch's d*H + h order).
    w1e = jnp.kron(jnp.eye(D, dtype=jnp.float32), w1.reshape(1, H).astype(jnp.float32))
    b1_flat = jnp.tile(b1.reshape(1, H).astype(jnp.float32), (1, D))    # (1, D*H)
    w2_col = w2.reshape(DH, 1).astype(jnp.float32)                      # (D*H, 1)
    b2_s = b2.reshape(1, 1).astype(jnp.float32)                         # SMEM scalar

    out_padded = pl.pallas_call(
        simple_nn_kernel,
        out_shape=jax.ShapeDtypeStruct((B_pad, 1), jnp.float32),
        grid=(num_tiles,),
        in_specs=[
            pl.BlockSpec((TB, D), lambda i: (i, 0)),       # x: tiled over batch
            pl.BlockSpec((D, DH), lambda i: (0, 0)),       # w1e: resident
            pl.BlockSpec((1, DH), lambda i: (0, 0)),       # b1: resident
            pl.BlockSpec((DH, 1), lambda i: (0, 0)),       # w2: resident
            pl.BlockSpec(memory_space=pltpu.MemorySpace.SMEM),  # b2 scalar
        ],
        out_specs=pl.BlockSpec((TB, 1), lambda i: (i, 0)),
        compiler_params=pltpu.CompilerParams(
            dimension_semantics=("parallel",),   # megacore sharding on v7x
        ),
    )(x_p, w1e, b1_flat, w2_col, b2_s)

    return out_padded[:B]


def simple_nn_reference(x, w1, b1, w2, b2):
    """Pure-JAX reference mirroring the PyTorch forward exactly."""
    B = x.shape[0]
    h = x.reshape(-1, 1) @ w1 + b1          # (B*D, H) == fc1
    h = jnp.maximum(h, 0.0)                 # ReLU
    h = h.reshape(B, -1)                    # (B, D*H)
    return h @ w2.reshape(-1, 1) + b2       # (B, 1) == fc2


if __name__ == "__main__":
    # Small shapes consistent with the module: input_dim=16, hidden_dim=32, batch=256
    # (two 128-row tiles so the batch grid / pipelining actually exercises).
    B, D, H = 256, 16, 32

    key = jax.random.PRNGKey(0)
    kx, kw1, kb1, kw2, kb2 = jax.random.split(key, 5)

    x = jax.random.normal(kx, (B, D), dtype=jnp.float32)

    # Deterministic parameter init (shapes from nn.Linear(1, H) and nn.Linear(D*H, 1)).
    w1 = jax.random.normal(kw1, (1, H), dtype=jnp.float32) * 0.5   # fc1.weight.T
    b1 = jax.random.normal(kb1, (1, H), dtype=jnp.float32) * 0.1   # fc1.bias
    w2 = jax.random.normal(kw2, (D, H), dtype=jnp.float32) * 0.1   # fc2.weight reshaped (D, H)
    b2 = jax.random.normal(kb2, (1, 1), dtype=jnp.float32) * 0.1   # fc2.bias

    # TODO(synk): nn.Dropout(0.75) is defined in __init__ but never used in forward,
    # so it is intentionally omitted here.

    out = simple_nn_forward(x, w1, b1, w2, b2)
    out = jax.block_until_ready(out)

    ref = simple_nn_reference(x, w1, b1, w2, b2)
    assert out.shape == (B, 1)
    # Tolerance covers MXU bf16-pass rounding of the K=512 contraction vs. the XLA reference.
    assert jnp.allclose(out, ref, atol=2e-2, rtol=2e-2), (out, ref)

    print("KERNEL_OK")
</pallas_src>

<mosaic_0001>
module attributes {stable_mosaic.version = 11 : i64} {
  func.func @simple_nn_kernel(%arg0: i32, %arg1: memref<128x16xf32, #tpu.memory_space<vmem>>, %arg2: memref<16x512xf32, #tpu.memory_space<vmem>>, %arg3: memref<1x512xf32, #tpu.memory_space<vmem>>, %arg4: memref<512x1xf32, #tpu.memory_space<vmem>>, %arg5: memref<1x1xf32, #tpu.memory_space<smem>>, %arg6: memref<128x1xf32, #tpu.memory_space<vmem>>) attributes {dimension_semantics = [#tpu.dimension_semantics<parallel>], iteration_bounds = array<i64: 2>, scalar_prefetch = 0 : i64, scratch_operands = 0 : i64, tpu.core_type = #tpu.core_type<tc>, window_params = [{transform_indices = @transform_0, window_bounds = array<i64: 128, 16>}, {pipeline_mode = #tpu.pipeline_mode<synchronous>, transform_indices = @transform_1, window_bounds = array<i64: 16, 512>}, {pipeline_mode = #tpu.pipeline_mode<synchronous>, transform_indices = @transform_2, window_bounds = array<i64: 1, 512>}, {pipeline_mode = #tpu.pipeline_mode<synchronous>, transform_indices = @transform_3, window_bounds = array<i64: 512, 1>}, {transform_indices = @transform_4, window_bounds = array<i64: 1, 1>}, {transform_indices = @transform_5, window_bounds = array<i64: 128, 1>}]} {
    %c0 = arith.constant 0 : index
    %c0_0 = arith.constant 0 : index
    %0 = vector.load %arg1[%c0, %c0_0] : memref<128x16xf32, #tpu.memory_space<vmem>>, vector<128x16xf32>
    %c0_1 = arith.constant 0 : index
    %c0_2 = arith.constant 0 : index
    %1 = vector.load %arg2[%c0_1, %c0_2] : memref<16x512xf32, #tpu.memory_space<vmem>>, vector<16x512xf32>
    %cst = arith.constant dense<0.000000e+00> : vector<128x512xf32>
    %2 = tpu.matmul %0, %1, %cst {dimension_numbers = #tpu.dot_dimension_numbers<[1], [0], [0], [1], [0, 0, 1, 1], [], []>} : vector<128x16xf32>, vector<16x512xf32>, vector<128x512xf32> -> vector<128x512xf32>
    %c0_3 = arith.constant 0 : index
    %c0_4 = arith.constant 0 : index
    %3 = vector.load %arg3[%c0_3, %c0_4] : memref<1x512xf32, #tpu.memory_space<vmem>>, vector<1x512xf32>
    %4 = vector.broadcast %3 : vector<1x512xf32> to vector<128x512xf32>
    %5 = arith.addf %2, %4 : vector<128x512xf32>
    %cst_5 = arith.constant 0.000000e+00 : f32
    %6 = vector.broadcast %cst_5 : f32 to vector<128x512xf32>
    %7 = arith.maximumf %5, %6 : vector<128x512xf32>
    %c0_6 = arith.constant 0 : index
    %c0_7 = arith.constant 0 : index
    %8 = vector.load %arg4[%c0_6, %c0_7] : memref<512x1xf32, #tpu.memory_space<vmem>>, vector<512x1xf32>
    %cst_8 = arith.constant dense<0.000000e+00> : vector<128x1xf32>
    %9 = tpu.matmul %7, %8, %cst_8 {dimension_numbers = #tpu.dot_dimension_numbers<[1], [0], [0], [1], [0, 0, 1, 1], [], []>} : vector<128x512xf32>, vector<512x1xf32>, vector<128x1xf32> -> vector<128x1xf32>
    %c0_9 = arith.constant 0 : index
    %c0_10 = arith.constant 0 : index
    %10 = memref.load %arg5[%c0_9, %c0_10] : memref<1x1xf32, #tpu.memory_space<smem>>
    %11 = vector.broadcast %10 : f32 to vector<128x1xf32>
    %12 = arith.addf %9, %11 : vector<128x1xf32>
    %c0_11 = arith.constant 0 : index
    %c0_12 = arith.constant 0 : index
    %13 = vector.load %arg6[%c0_11, %c0_12] : memref<128x1xf32, #tpu.memory_space<vmem>>, vector<128x1xf32>
    tpu.vector_store %arg6[%c0_11, %c0_12], %12 {strides = array<i32>} : memref<128x1xf32, #tpu.memory_space<vmem>>, vector<128x1xf32>,
    return
  }
  func.func @transform_0(%arg0: i32) -> (i32, i32) {
    %c0_i32 = arith.constant 0 : i32
    %c0_i32_0 = arith.constant 0 : i32
    return %arg0, %c0_i32 : i32, i32
  }
  func.func @transform_1(%arg0: i32) -> (i32, i32) {
    %c0_i32 = arith.constant 0 : i32
    %c0_i32_0 = arith.constant 0 : i32
    %c0_i32_1 = arith.constant 0 : i32
    return %c0_i32, %c0_i32_0 : i32, i32
  }
  func.func @transform_2(%arg0: i32) -> (i32, i32) {
    %c0_i32 = arith.constant 0 : i32
    %c0_i32_0 = arith.constant 0 : i32
    %c0_i32_1 = arith.constant 0 : i32
    return %c0_i32, %c0_i32_0 : i32, i32
  }
  func.func @transform_3(%arg0: i32) -> (i32, i32) {
    %c0_i32 = arith.constant 0 : i32
    %c0_i32_0 = arith.constant 0 : i32
    %c0_i32_1 = arith.constant 0 : i32
    return %c0_i32, %c0_i32_0 : i32, i32
  }
  func.func @transform_4(%arg0: i32) -> (i32, i32) {
    %c0_i32 = arith.constant 0 : i32
    %c0_i32_0 = arith.constant 0 : i32
    %c0_i32_1 = arith.constant 0 : i32
    return %c0_i32, %c0_i32_0 : i32, i32
  }
  func.func @transform_5(%arg0: i32) -> (i32, i32) {
    %c0_i32 = arith.constant 0 : i32
    %c0_i32_0 = arith.constant 0 : i32
    return %arg0, %c0_i32 : i32, i32
  }
}

</mosaic_0001>

<llo_original>
// kernel: tpu_custom_call.1
$region0: #{tpu_custom_call.1}
  #allocation0 [shape = 'u32[]', space=smem, size = 0x4, offset = 0x4, fixed_abs, tag = 'smem constant byte address 0x4 - core index']
  #allocation1 [shape = 'u32[72,128]{1,0:T(1,128)}', space=vmem, size = 0x9000, scoped, tag = 'internal scratch']
  #allocation2 [shape = 'f32[1,1]{1,0:T(1,128)S(6)}', space=smem, size = 0x200, scoped, tag = 'scoped memory for tpu_custom_call.1']
  %s0 = inlined_call_operand.vmem [shape: f32[256,16], index: 0, kind: input, shape index: {}]
  %s1 = inlined_call_operand.vmem [shape: f32[16,512], index: 1, kind: input, shape index: {}]
  %s2 = inlined_call_operand.vmem [shape: f32[1,512], index: 2, kind: input, shape index: {}]
  %s3 = inlined_call_operand.vmem [shape: f32[512,1], index: 3, kind: input, shape index: {}]
  %s4 = inlined_call_operand.<no memory space> [shape: f32[1,1], index: 4, kind: input, shape index: {}]
  %s5 = inlined_call_operand.vmem [shape: f32[256,1], index: 5, kind: output, shape index: {}]
  %s6 = sld [smem:[#allocation0]]
  $region53: #{tpu_custom_call.1} parent=0
    _
  %s8 = ssub.s32 1, %s6
  %s9 = scalar_select 0, %s8, %s6
  %10 = sst [smem:[#allocation2]] %s4
  loop: start=0, step=1, limit=4
  $region2: #{tpu_custom_call.1} parent=0 // loop_pre_header
    _
  $region3: #{tpu_custom_call.1} parent=0 // loop_header
    %s12 = sphi 0, %s16
    %p13 = scmp.ge.s32.totalorder %s12, 4
    %s22 = sphi 0, %s24
    %s25 = sphi 0, %s22
    %s26 = sphi 0, %s25
    %s42 = sphi 0, %s26
    %s46 = sphi 0, %s46
    %s48 = sphi 0, %s46
    %s49 = sphi 0, %s48
    %s63 = sphi 0, %s49
    %s67 = sphi 0, %s67
    %s69 = sphi 0, %s67
    %s70 = sphi 0, %s69
    %s84 = sphi 0, %s70
    %s88 = sphi 0, %s88
    %s90 = sphi 0, %s88
    %s91 = sphi 0, %s90
    %s105 = sphi 0, %s91
    %s109 = sphi 0, %s109
    %s111 = sphi 0, %s109
    %s112 = sphi 0, %s111
    %s126 = sphi 0, %s112
    %s132 = sphi 0, %s134
    %s135 = sphi 0, %s132
    %s136 = sphi 0, %s135
    %s152 = sphi 0, %s136
  $region4: #{tpu_custom_call.1} parent=0 // loop_header_branch
    %15 = sbr.rel (%p13) target = $region8
  $region5: #{tpu_custom_call.1} parent=0 // loop_body
    %s17 = ssub.s32 %s12, 1
    %s18 = ssub.s32 %s12, 2
    %s19 = sadd.s32 %s12, 1
    %s20 = ssub.s32 %s12, %s19
    %p21 = scmp.eq.s32.totalorder %s20, 0
    %s23 = sadd.s32 %s22, 1
    %s24 = scalar_select %p21, %s22, %s23
    %p27 = pneg %p21
    %p28 = scmp.eq.s32.totalorder %s12, 1
    %p29 = por %p27, %p28
    %p30 = scmp.ne.s32.totalorder %s22, %s25
    %p31 = scmp.eq.s32.totalorder %s12, 0
    %p32 = por %p30, %p31
    %p33 = scmp.ne.s32.totalorder %s22, %s25
    %p34 = scmp.eq.s32.totalorder %s17, 1
    %p35 = por %p33, %p34
    %p36 = scmp.ne.s32.totalorder %s25, %s26
    %p37 = scmp.eq.s32.totalorder %s17, 0
    %p38 = por %p36, %p37
    %p39 = scmp.ne.s32.totalorder %s25, %s26
    %p40 = scmp.eq.s32.totalorder %s18, 1
    %p41 = por %p39, %p40
    %p43 = scmp.ne.s32.totalorder %s26, %s42
    %p44 = scmp.eq.s32.totalorder %s18, 0
    %p45 = por %p43, %p44
    %s47 = sadd.s32 %s46, 1
    %p50 = scmp.eq.s32.totalorder %s12, 1
    %p51 = scmp.ne.s32.totalorder %s46, %s48
    %p52 = scmp.eq.s32.totalorder %s12, 0
    %p53 = por %p51, %p52
    %p54 = scmp.ne.s32.totalorder %s46, %s48
    %p55 = scmp.eq.s32.totalorder %s17, 1
    %p56 = por %p54, %p55
    %p57 = scmp.ne.s32.totalorder %s48, %s49
    %p58 = scmp.eq.s32.totalorder %s17, 0
    %p59 = por %p57, %p58
    %p60 = scmp.ne.s32.totalorder %s48, %s49
    %p61 = scmp.eq.s32.totalorder %s18, 1
    %p62 = por %p60, %p61
    %p64 = scmp.ne.s32.totalorder %s49, %s63
    %p65 = scmp.eq.s32.totalorder %s18, 0
    %p66 = por %p64, %p65
    %s68 = sadd.s32 %s67, 1
    %p71 = scmp.eq.s32.totalorder %s12, 1
    %p72 = scmp.ne.s32.totalorder %s67, %s69
    %p73 = scmp.eq.s32.totalorder %s12, 0
    %p74 = por %p72, %p73
    %p75 = scmp.ne.s32.totalorder %s67, %s69
    %p76 = scmp.eq.s32.totalorder %s17, 1
    %p77 = por %p75, %p76
    %p78 = scmp.ne.s32.totalorder %s69, %s70
    %p79 = scmp.eq.s32.totalorder %s17, 0
    %p80 = por %p78, %p79
    %p81 = scmp.ne.s32.totalorder %s69, %s70
    %p82 = scmp.eq.s32.totalorder %s18, 1
    %p83 = por %p81, %p82
    %p85 = scmp.ne.s32.totalorder %s70, %s84
    %p86 = scmp.eq.s32.totalorder %s18, 0
    %p87 = por %p85, %p86
    %s89 = sadd.s32 %s88, 1
    %p92 = scmp.eq.s32.totalorder %s12, 1
    %p93 = scmp.ne.s32.totalorder %s88, %s90
    %p94 = scmp.eq.s32.totalorder %s12, 0
    %p95 = por %p93, %p94
    %p96 = scmp.ne.s32.totalorder %s88, %s90
    %p97 = scmp.eq.s32.totalorder %s17, 1
    %p98 = por %p96, %p97
    %p99 = scmp.ne.s32.totalorder %s90, %s91
    %p100 = scmp.eq.s32.totalorder %s17, 0
    %p101 = por %p99, %p100
    %p102 = scmp.ne.s32.totalorder %s90, %s91
    %p103 = scmp.eq.s32.totalorder %s18, 1
    %p104 = por %p102, %p103
    %p106 = scmp.ne.s32.totalorder %s91, %s105
    %p107 = scmp.eq.s32.totalorder %s18, 0
    %p108 = por %p106, %p107
    %s110 = sadd.s32 %s109, 1
    %p113 = scmp.eq.s32.totalorder %s12, 1
    %p114 = scmp.ne.s32.totalorder %s109, %s111
    %p115 = scmp.eq.s32.totalorder %s12, 0
    %p116 = por %p114, %p115
    %p117 = scmp.ne.s32.totalorder %s109, %s111
    %p118 = scmp.eq.s32.totalorder %s17, 1
    %p119 = por %p117, %p118
    %p120 = scmp.ne.s32.totalorder %s111, %s112
    %p121 = scmp.eq.s32.totalorder %s17, 0
    %p122 = por %p120, %p121
    %p123 = scmp.ne.s32.totalorder %s111, %s112
    %p124 = scmp.eq.s32.totalorder %s18, 1
    %p125 = por %p123, %p124
    %p127 = scmp.ne.s32.totalorder %s112, %s126
    %p128 = scmp.eq.s32.totalorder %s18, 0
    %p129 = por %p127, %p128
    %s130 = ssub.s32 %s12, %s19
    %p131 = scmp.eq.s32.totalorder %s130, 0
    %s133 = sadd.s32 %s132, 1
    %s134 = scalar_select %p131, %s132, %s133
    %p137 = pneg %p131
    %p138 = scmp.eq.s32.totalorder %s12, 1
    %p139 = por %p137, %p138
    %p140 = scmp.ne.s32.totalorder %s132, %s135
    %p141 = scmp.eq.s32.totalorder %s12, 0
    %p142 = por %p140, %p141
    %p143 = scmp.ne.s32.totalorder %s132, %s135
    %p144 = scmp.eq.s32.totalorder %s17, 1
    %p145 = por %p143, %p144
    %p146 = scmp.ne.s32.totalorder %s135, %s136
    %p147 = scmp.eq.s32.totalorder %s17, 0
    %p148 = por %p146, %p147
    %p149 = scmp.ne.s32.totalorder %s135, %s136
    %p150 = scmp.eq.s32.totalorder %s18, 1
    %p151 = por %p149, %p150
    %p153 = scmp.ne.s32.totalorder %s136, %s152
    %p154 = scmp.eq.s32.totalorder %s18, 0
    %p155 = por %p153, %p154
    %p156 = scmp.le.s32.totalorder 1, %s12
    %p157 = scmp.lt.s32.totalorder %s12, 3
    %p158 = pnand %p156, %p157
    %p159 = pneg %p158
    // Predicated region
    $region9: #{tpu_custom_call.1} parent=5 // pred_check
      _
    $region10: #{tpu_custom_call.1} parent=5 // pred_check_branch
      %161 = sbr.rel (%p158) target = $region12
    $region11: #{tpu_custom_call.1} parent=5 // pred_region
      %s162 = ssub.s32 %s12, 1
      // Predicated region
      $region13: #{tpu_custom_call.1} parent=11 // pred_check
        %p163 = pneg %p59
      $region14: #{tpu_custom_call.1} parent=11 // pred_check_branch
        %165 = sbr.rel (%p163) target = $region16
      $region15: #{tpu_custom_call.1} parent=11 // pred_region
        _
      $region16: #{tpu_custom_call.1} parent=11 // pred_fallthru
        _
      // Predicated region
      $region17: #{tpu_custom_call.1} parent=11 // pred_check
        %p166 = pneg %p80
      $region18: #{tpu_custom_call.1} parent=11 // pred_check_branch
        %168 = sbr.rel (%p166) target = $region20
      $region19: #{tpu_custom_call.1} parent=11 // pred_region
        _
      $region20: #{tpu_custom_call.1} parent=11 // pred_fallthru
        _
      // Predicated region
      $region21: #{tpu_custom_call.1} parent=11 // pred_check
        %p169 = pneg %p101
      $region22: #{tpu_custom_call.1} parent=11 // pred_check_branch
        %171 = sbr.rel (%p169) target = $region24
      $region23: #{tpu_custom_call.1} parent=11 // pred_region
        _
      $region24: #{tpu_custom_call.1} parent=11 // pred_fallthru
        _
      // Predicated region
      $region25: #{tpu_custom_call.1} parent=11 // pred_check
        %p172 = pneg %p122
      $region26: #{tpu_custom_call.1} parent=11 // pred_check_branch
        %174 = sbr.rel (%p172) target = $region28
      $region27: #{tpu_custom_call.1} parent=11 // pred_region
        _
      $region28: #{tpu_custom_call.1} parent=11 // pred_fallthru
        _
    $region12: #{tpu_custom_call.1} parent=5 // pred_fallthru
      _
    %p175 = scmp.lt.s32.totalorder %s12, 2
    // Predicated region
    $region29: #{tpu_custom_call.1} parent=5 // pred_check
      %p176 = pneg %p175
    $region30: #{tpu_custom_call.1} parent=5 // pred_check_branch
      %178 = sbr.rel (%p176) target = $region32
    $region31: #{tpu_custom_call.1} parent=5 // pred_region
      // Predicated region
      $region33: #{tpu_custom_call.1} parent=31 // pred_check
        %p179 = pneg %p32
      $region34: #{tpu_custom_call.1} parent=31 // pred_check_branch
        %181 = sbr.rel (%p179) target = $region36
      $region35: #{tpu_custom_call.1} parent=31 // pred_region
        %s182 = smul.u32 16, %s12
        %p183 = scmp.lt.s32.totalorder %s182, 31
        %s184 = scalar_select %p183, %s182, 31
        %s185 = smul.addr %s184, 8
        %s186 = scalar_lea.vmem %s0, %s185
        %s187 = smul.u32 16, %s12
      $region36: #{tpu_custom_call.1} parent=31 // pred_fallthru
        _
    $region32: #{tpu_custom_call.1} parent=5 // pred_fallthru
      _
    %p188 = scmp.le.s32.totalorder 1, %s12
    %p189 = scmp.lt.s32.totalorder %s12, 3
    %p190 = pnand %p188, %p189
    %p191 = pneg %p190
    // Predicated region
    $region37: #{tpu_custom_call.1} parent=5 // pred_check
      _
    $region38: #{tpu_custom_call.1} parent=5 // pred_check_branch
      %193 = sbr.rel (%p190) target = $region40
    $region39: #{tpu_custom_call.1} parent=5 // pred_region
      %s194 = ssub.s32 %s12, 1
      %s195 = smul.u32 16, %s17
      %p196 = scmp.lt.s32.totalorder %s195, 31
      %s197 = scalar_select %p196, %s195, 31
      %s198 = smul.addr %s197, 8
      %s199 = scalar_lea.vmem %s0, %s198
      %p200 = pneg %p38
      %p201 = pneg %p35
      %p202 = pneg %p59
      %p203 = pneg %p56
      %p204 = pneg %p80
      %p205 = pneg %p77
      %p206 = pneg %p101
      %p207 = pneg %p98
      %p208 = pneg %p122
      %p209 = pneg %p119
      %p210 = pneg %p148
      %p211 = pneg %p145
      %s212 = smul.u32 16, %s17
      %p213 = scmp.lt.s32.totalorder %s212, 31
      %s214 = scalar_select %p213, %s212, 31
      %s215 = smul.addr %s214, 8
      %s216 = scalar_lea.vmem %s5, %s215
      %s217 = smul.u32 16, %s17
      %p218 = scmp.lt.s32.totalorder %s217, 31
      %s219 = scalar_select %p218, %s217, 31
      %s220 = smul.addr %s219, 8
      %s221 = scalar_lea.vmem %s0, %s220
      %s222 = smul.u32 16, %s17
      %s223 = smul.u32 16, %s17
      %p224 = scmp.lt.s32.totalorder %s223, 31
      %s225 = scalar_select %p224, %s223, 31
      %s226 = smul.addr %s225, 8
      %s227 = scalar_lea.vmem %s5, %s226
      %s228 = smul.u32 16, %s17
      %v229 = vld [vmem:[%s221] sm:$0xff]
      %v230 = vld [vmem:[%s221 + $0x8] sm:$0xff]
      %v231 = vld [vmem:[%s221 + $0x10] sm:$0xff]
      %v232 = vld [vmem:[%s221 + $0x18] sm:$0xff]
      %v233 = vld [vmem:[%s221 + $0x20] sm:$0xff]
      %v234 = vld [vmem:[%s221 + $0x28] sm:$0xff]
      %v235 = vld [vmem:[%s221 + $0x30] sm:$0xff]
      %v236 = vld [vmem:[%s221 + $0x38] sm:$0xff]
      %v237 = vld [vmem:[%s221 + $0x40] sm:$0xff]
      %v238 = vld [vmem:[%s221 + $0x48] sm:$0xff]
      %v239 = vld [vmem:[%s221 + $0x50] sm:$0xff]
      %v240 = vld [vmem:[%s221 + $0x58] sm:$0xff]
      %v241 = vld [vmem:[%s221 + $0x60] sm:$0xff]
      %v242 = vld [vmem:[%s221 + $0x68] sm:$0xff]
      %v243 = vld [vmem:[%s221 + $0x70] sm:$0xff]
      %v244 = vld [vmem:[%s221 + $0x78] sm:$0xff]
      %v245 = vld [vmem:[%s1] sm:$0xff]
      %v246 = vld [vmem:[%s1 + $0x8] sm:$0xff]
      %v247 = vld [vmem:[%s1 + $0x10] sm:$0xff]
      %v248 = vld [vmem:[%s1 + $0x18] sm:$0xff]
      %v249 = vld [vmem:[%s1 + $0x20] sm:$0xff]
      %v250 = vld [vmem:[%s1 + $0x28] sm:$0xff]
      %v251 = vld [vmem:[%s1 + $0x30] sm:$0xff]
      %v252 = vld [vmem:[%s1 + $0x38] sm:$0xff]
      %v253 = vld [vmem:[%s2] sm:$0xf]
      %v255 = vperm.slane %v253, 0
      %v256 = vperm.slane %v253, 1
      %v257 = vperm.slane %v253, 2
      %v258 = vperm.slane %v253, 3
      %vm263 = vcmask 130048
      %v265 = vsel %vm263, %v229, 0
      %v268 = vsel %vm263, %v230, 0
      %v271 = vsel %vm263, %v231, 0
      %v274 = vsel %vm263, %v232, 0
      %v277 = vsel %vm263, %v233, 0
      %v280 = vsel %vm263, %v234, 0
      %v283 = vsel %vm263, %v235, 0
      %v286 = vsel %vm263, %v236, 0
      %v289 = vsel %vm263, %v237, 0
      %v292 = vsel %vm263, %v238, 0
      %v295 = vsel %vm263, %v239, 0
      %v298 = vsel %vm263, %v240, 0
      %v301 = vsel %vm263, %v241, 0
      %v304 = vsel %vm263, %v242, 0
      %v307 = vsel %vm263, %v243, 0
      %v310 = vsel %vm263, %v244, 0
      %312 = vmatpush.msra.mxu0 0.0
      %313 = vmatpush.msra.mxu0 0.0
      %314 = vmatpush.msra.mxu0 0.0
      %315 = vmatpush.msra.mxu0 0.0
      %316 = vmatpush.msra.mxu0 0.0
      %317 = vmatpush.msra.mxu0 0.0
      %318 = vmatpush.msra.mxu0 0.0
      %319 = vmatpush.msra.mxu0 0.0
      %320 = vmatpush.msra.mxu0 0.0
      %321 = vmatpush.msra.mxu0 0.0
      %322 = vmatpush.msra.mxu0 0.0
      %323 = vmatpush.msra.mxu0 0.0
      %324 = vmatpush.msra.mxu0 0.0
      %325 = vmatpush.msra.mxu0 0.0
      %326 = vmatpush.msra.mxu0 %v249
      %327 = vmatpush.msra.mxu0 %v245
      %328 = vmatmul.f32.gmra.mxu0 %v265
      %v329 = vpop.f32.mrf.mxu0
      %v330 = vadd.f32 %v255, %v329
      %331 = vmatmul.f32.gmra.mxu0 %v268
      %v332 = vpop.f32.mrf.mxu0
      %v333 = vadd.f32 %v255, %v332
      %334 = vmatmul.f32.gmra.mxu0 %v271
      %v335 = vpop.f32.mrf.mxu0
      %v336 = vadd.f32 %v255, %v335
      %337 = vmatmul.f32.gmra.mxu0 %v274
      %v338 = vpop.f32.mrf.mxu0
      %v339 = vadd.f32 %v255, %v338
      %340 = vmatmul.f32.gmra.mxu0 %v277
      %v341 = vpop.f32.mrf.mxu0
      %v342 = vadd.f32 %v255, %v341
      %343 = vmatmul.f32.gmra.mxu0 %v280
      %v344 = vpop.f32.mrf.mxu0
      %v345 = vadd.f32 %v255, %v344
      %346 = vmatmul.f32.gmra.mxu0 %v283
      %v347 = vpop.f32.mrf.mxu0
      %v348 = vadd.f32 %v255, %v347
      %349 = vmatmul.f32.gmra.mxu0 %v286
      %v350 = vpop.f32.mrf.mxu0
      %v351 = vadd.f32 %v255, %v350
      %352 = vmatmul.f32.gmra.mxu0 %v289
      %v353 = vpop.f32.mrf.mxu0
      %v354 = vadd.f32 %v255, %v353
      %355 = vmatmul.f32.gmra.mxu0 %v292
      %v356 = vpop.f32.mrf.mxu0
      %v357 = vadd.f32 %v255, %v356
      %358 = vmatmul.f32.gmra.mxu0 %v295
      %v359 = vpop.f32.mrf.mxu0
      %v360 = vadd.f32 %v255, %v359
      %361 = vmatmul.f32.gmra.mxu0 %v298
      %v362 = vpop.f32.mrf.mxu0
      %v363 = vadd.f32 %v255, %v362
      %364 = vmatmul.f32.gmra.mxu0 %v301
      %v365 = vpop.f32.mrf.mxu0
      %v366 = vadd.f32 %v255, %v365
      %367 = vmatmul.f32.gmra.mxu0 %v304
      %v368 = vpop.f32.mrf.mxu0
      %v369 = vadd.f32 %v255, %v368
      %370 = vmatmul.f32.gmra.mxu0 %v307
      %v371 = vpop.f32.mrf.mxu0
      %v372 = vadd.f32 %v255, %v371
      %373 = vmatmul.f32.gmra.mxu0 %v310
      %v374 = vpop.f32.mrf.mxu0
      %v375 = vadd.f32 %v255, %v374
      %376 = vdwg.mxu0
      %377 = vmatpush.msra.mxu0 0.0
      %378 = vmatpush.msra.mxu0 0.0
      %379 = vmatpush.msra.mxu0 0.0
      %380 = vmatpush.msra.mxu0 0.0
      %381 = vmatpush.msra.mxu0 0.0
      %382 = vmatpush.msra.mxu0 0.0
      %383 = vmatpush.msra.mxu0 0.0
      %384 = vmatpush.msra.mxu0 0.0
      %385 = vmatpush.msra.mxu0 0.0
      %386 = vmatpush.msra.mxu0 0.0
      %387 = vmatpush.msra.mxu0 0.0
      %388 = vmatpush.msra.mxu0 0.0
      %389 = vmatpush.msra.mxu0 0.0
      %390 = vmatpush.msra.mxu0 0.0
      %391 = vmatpush.msra.mxu0 %v250
      %392 = vmatpush.msra.mxu0 %v246
      %393 = vmatmul.f32.gmra.mxu0 %v265
      %v394 = vpop.f32.mrf.mxu0
      %v395 = vadd.f32 %v256, %v394
      %396 = vmatmul.f32.gmra.mxu0 %v268
      %v397 = vpop.f32.mrf.mxu0
      %v398 = vadd.f32 %v256, %v397
      %399 = vmatmul.f32.gmra.mxu0 %v271
      %v400 = vpop.f32.mrf.mxu0
      %v401 = vadd.f32 %v256, %v400
      %402 = vmatmul.f32.gmra.mxu0 %v274
      %v403 = vpop.f32.mrf.mxu0
      %v404 = vadd.f32 %v256, %v403
      %405 = vmatmul.f32.gmra.mxu0 %v277
      %v406 = vpop.f32.mrf.mxu0
      %v407 = vadd.f32 %v256, %v406
      %408 = vmatmul.f32.gmra.mxu0 %v280
      %v409 = vpop.f32.mrf.mxu0
      %v410 = vadd.f32 %v256, %v409
      %411 = vmatmul.f32.gmra.mxu0 %v283
      %v412 = vpop.f32.mrf.mxu0
      %v413 = vadd.f32 %v256, %v412
      %414 = vmatmul.f32.gmra.mxu0 %v286
      %v415 = vpop.f32.mrf.mxu0
      %v416 = vadd.f32 %v256, %v415
      %417 = vmatmul.f32.gmra.mxu0 %v289
      %v418 = vpop.f32.mrf.mxu0
      %v419 = vadd.f32 %v256, %v418
      %420 = vmatmul.f32.gmra.mxu0 %v292
      %v421 = vpop.f32.mrf.mxu0
      %v422 = vadd.f32 %v256, %v421
      %423 = vmatmul.f32.gmra.mxu0 %v295
      %v424 = vpop.f32.mrf.mxu0
      %v425 = vadd.f32 %v256, %v424
      %426 = vmatmul.f32.gmra.mxu0 %v298
      %v427 = vpop.f32.mrf.mxu0
      %v428 = vadd.f32 %v256, %v427
      %429 = vmatmul.f32.gmra.mxu0 %v301
      %v430 = vpop.f32.mrf.mxu0
      %v431 = vadd.f32 %v256, %v430
      %432 = vmatmul.f32.gmra.mxu0 %v304
      %v433 = vpop.f32.mrf.mxu0
      %v434 = vadd.f32 %v256, %v433
      %435 = vmatmul.f32.gmra.mxu0 %v307
      %v436 = vpop.f32.mrf.mxu0
      %v437 = vadd.f32 %v256, %v436
      %438 = vmatmul.f32.gmra.mxu0 %v310
      %v439 = vpop.f32.mrf.mxu0
      %v440 = vadd.f32 %v256, %v439
      %441 = vdwg.mxu0
      %442 = vmatpush.msra.mxu0 0.0
      %443 = vmatpush.msra.mxu0 0.0
      %444 = vmatpush.msra.mxu0 0.0
      %445 = vmatpush.msra.mxu0 0.0
      %446 = vmatpush.msra.mxu0 0.0
      %447 = vmatpush.msra.mxu0 0.0
      %448 = vmatpush.msra.mxu0 0.0
      %449 = vmatpush.msra.mxu0 0.0
      %450 = vmatpush.msra.mxu0 0.0
      %451 = vmatpush.msra.mxu0 0.0
      %452 = vmatpush.msra.mxu0 0.0
      %453 = vmatpush.msra.mxu0 0.0
      %454 = vmatpush.msra.mxu0 0.0
      %455 = vmatpush.msra.mxu0 0.0
      %456 = vmatpush.msra.mxu0 %v251
      %457 = vmatpush.msra.mxu0 %v247
      %458 = vmatmul.f32.gmra.mxu0 %v265
      %v459 = vpop.f32.mrf.mxu0
      %v460 = vadd.f32 %v257, %v459
      %461 = vmatmul.f32.gmra.mxu0 %v268
      %v462 = vpop.f32.mrf.mxu0
      %v463 = vadd.f32 %v257, %v462
      %464 = vmatmul.f32.gmra.mxu0 %v271
      %v465 = vpop.f32.mrf.mxu0
      %v466 = vadd.f32 %v257, %v465
      %467 = vmatmul.f32.gmra.mxu0 %v274
      %v468 = vpop.f32.mrf.mxu0
      %v469 = vadd.f32 %v257, %v468
      %470 = vmatmul.f32.gmra.mxu0 %v277
      %v471 = vpop.f32.mrf.mxu0
      %v472 = vadd.f32 %v257, %v471
      %473 = vmatmul.f32.gmra.mxu0 %v280
      %v474 = vpop.f32.mrf.mxu0
      %v475 = vadd.f32 %v257, %v474
      %476 = vmatmul.f32.gmra.mxu0 %v283
      %v477 = vpop.f32.mrf.mxu0
      %v478 = vadd.f32 %v257, %v477
      %479 = vmatmul.f32.gmra.mxu0 %v286
      %v480 = vpop.f32.mrf.mxu0
      %v481 = vadd.f32 %v257, %v480
      %482 = vmatmul.f32.gmra.mxu0 %v289
      %v483 = vpop.f32.mrf.mxu0
      %v484 = vadd.f32 %v257, %v483
      %485 = vmatmul.f32.gmra.mxu0 %v292
      %v486 = vpop.f32.mrf.mxu0
      %v487 = vadd.f32 %v257, %v486
      %488 = vmatmul.f32.gmra.mxu0 %v295
      %v489 = vpop.f32.mrf.mxu0
      %v490 = vadd.f32 %v257, %v489
      %491 = vmatmul.f32.gmra.mxu0 %v298
      %v492 = vpop.f32.mrf.mxu0
      %v493 = vadd.f32 %v257, %v492
      %494 = vmatmul.f32.gmra.mxu0 %v301
      %v495 = vpop.f32.mrf.mxu0
      %v496 = vadd.f32 %v257, %v495
      %497 = vmatmul.f32.gmra.mxu0 %v304
      %v498 = vpop.f32.mrf.mxu0
      %v499 = vadd.f32 %v257, %v498
      %500 = vmatmul.f32.gmra.mxu0 %v307
      %v501 = vpop.f32.mrf.mxu0
      %v502 = vadd.f32 %v257, %v501
      %503 = vmatmul.f32.gmra.mxu0 %v310
      %v504 = vpop.f32.mrf.mxu0
      %v505 = vadd.f32 %v257, %v504
      %506 = vdwg.mxu0
      %507 = vmatpush.msra.mxu0 0.0
      %508 = vmatpush.msra.mxu0 0.0
      %509 = vmatpush.msra.mxu0 0.0
      %510 = vmatpush.msra.mxu0 0.0
      %511 = vmatpush.msra.mxu0 0.0
      %512 = vmatpush.msra.mxu0 0.0
      %513 = vmatpush.msra.mxu0 0.0
      %514 = vmatpush.msra.mxu0 0.0
      %515 = vmatpush.msra.mxu0 0.0
      %516 = vmatpush.msra.mxu0 0.0
      %517 = vmatpush.msra.mxu0 0.0
      %518 = vmatpush.msra.mxu0 0.0
      %519 = vmatpush.msra.mxu0 0.0
      %520 = vmatpush.msra.mxu0 0.0
      %521 = vmatpush.msra.mxu0 %v252
      %522 = vmatpush.msra.mxu0 %v248
      %523 = vmatmul.f32.gmra.mxu0 %v265
      %v524 = vpop.f32.mrf.mxu0
      %v525 = vadd.f32 %v258, %v524
      %526 = vmatmul.f32.gmra.mxu0 %v268
      %v527 = vpop.f32.mrf.mxu0
      %v528 = vadd.f32 %v258, %v527
      %529 = vmatmul.f32.gmra.mxu0 %v271
      %v530 = vpop.f32.mrf.mxu0
      %v531 = vadd.f32 %v258, %v530
      %532 = vmatmul.f32.gmra.mxu0 %v274
      %v533 = vpop.f32.mrf.mxu0
      %v534 = vadd.f32 %v258, %v533
      %535 = vmatmul.f32.gmra.mxu0 %v277
      %v536 = vpop.f32.mrf.mxu0
      %v537 = vadd.f32 %v258, %v536
      %538 = vmatmul.f32.gmra.mxu0 %v280
      %v539 = vpop.f32.mrf.mxu0
      %v540 = vadd.f32 %v258, %v539
      %541 = vmatmul.f32.gmra.mxu0 %v283
      %v542 = vpop.f32.mrf.mxu0
      %v543 = vadd.f32 %v258, %v542
      %544 = vmatmul.f32.gmra.mxu0 %v286
      %v545 = vpop.f32.mrf.mxu0
      %v546 = vadd.f32 %v258, %v545
      %547 = vmatmul.f32.gmra.mxu0 %v289
      %v548 = vpop.f32.mrf.mxu0
      %v549 = vadd.f32 %v258, %v548
      %550 = vmatmul.f32.gmra.mxu0 %v292
      %v551 = vpop.f32.mrf.mxu0
      %v552 = vadd.f32 %v258, %v551
      %553 = vmatmul.f32.gmra.mxu0 %v295
      %v554 = vpop.f32.mrf.mxu0
      %v555 = vadd.f32 %v258, %v554
      %556 = vmatmul.f32.gmra.mxu0 %v298
      %v557 = vpop.f32.mrf.mxu0
      %v558 = vadd.f32 %v258, %v557
      %559 = vmatmul.f32.gmra.mxu0 %v301
      %v560 = vpop.f32.mrf.mxu0
      %v561 = vadd.f32 %v258, %v560
      %562 = vmatmul.f32.gmra.mxu0 %v304
      %v563 = vpop.f32.mrf.mxu0
      %v564 = vadd.f32 %v258, %v563
      %565 = vmatmul.f32.gmra.mxu0 %v307
      %v566 = vpop.f32.mrf.mxu0
      %v567 = vadd.f32 %v258, %v566
      %568 = vmatmul.f32.gmra.mxu0 %v310
      %v569 = vpop.f32.mrf.mxu0
      %v570 = vadd.f32 %v258, %v569
      %571 = vdwg.mxu0
      %v572 = vmax.f32 %v330, 0.0
      %v573 = vmax.f32 %v395, 0.0
      %v574 = vmax.f32 %v460, 0.0
      %v575 = vmax.f32 %v525, 0.0
      %v576 = vmax.f32 %v333, 0.0
      %v577 = vmax.f32 %v398, 0.0
      %v578 = vmax.f32 %v463, 0.0
      %v579 = vmax.f32 %v528, 0.0
      %v580 = vmax.f32 %v336, 0.0
      %v581 = vmax.f32 %v401, 0.0
      %v582 = vmax.f32 %v466, 0.0
      %v583 = vmax.f32 %v531, 0.0
      %v584 = vmax.f32 %v339, 0.0
      %v585 = vmax.f32 %v404, 0.0
      %v586 = vmax.f32 %v469, 0.0
      %v587 = vmax.f32 %v534, 0.0
      %v588 = vmax.f32 %v342, 0.0
      %v589 = vmax.f32 %v407, 0.0
      %v590 = vmax.f32 %v472, 0.0
      %v591 = vmax.f32 %v537, 0.0
      %v592 = vmax.f32 %v345, 0.0
      %v593 = vmax.f32 %v410, 0.0
      %v594 = vmax.f32 %v475, 0.0
      %v595 = vmax.f32 %v540, 0.0
      %v596 = vmax.f32 %v348, 0.0
      %v597 = vmax.f32 %v413, 0.0
      %v598 = vmax.f32 %v478, 0.0
      %v599 = vmax.f32 %v543, 0.0
      %v600 = vmax.f32 %v351, 0.0
      %v601 = vmax.f32 %v416, 0.0
      %v602 = vmax.f32 %v481, 0.0
      %v603 = vmax.f32 %v546, 0.0
      %v604 = vmax.f32 %v354, 0.0
      %v605 = vmax.f32 %v419, 0.0
      %v606 = vmax.f32 %v484, 0.0
      %v607 = vmax.f32 %v549, 0.0
      %v608 = vmax.f32 %v357, 0.0
      %v609 = vmax.f32 %v422, 0.0
      %v610 = vmax.f32 %v487, 0.0
      %v611 = vmax.f32 %v552, 0.0
      %v612 = vmax.f32 %v360, 0.0
      %v613 = vmax.f32 %v425, 0.0
      %v614 = vmax.f32 %v490, 0.0
      %v615 = vmax.f32 %v555, 0.0
      %v616 = vmax.f32 %v363, 0.0
      %v617 = vmax.f32 %v428, 0.0
      %v618 = vmax.f32 %v493, 0.0
      %v619 = vmax.f32 %v558, 0.0
      %v620 = vmax.f32 %v366, 0.0
      %v621 = vmax.f32 %v431, 0.0
      %v622 = vmax.f32 %v496, 0.0
      %v623 = vmax.f32 %v561, 0.0
      %v624 = vmax.f32 %v369, 0.0
      %v625 = vmax.f32 %v434, 0.0
      %v626 = vmax.f32 %v499, 0.0
      %v627 = vmax.f32 %v564, 0.0
      %v628 = vmax.f32 %v372, 0.0
      %v629 = vmax.f32 %v437, 0.0
      %v630 = vmax.f32 %v502, 0.0
      %v631 = vmax.f32 %v567, 0.0
      %v632 = vmax.f32 %v375, 0.0
      %v633 = vmax.f32 %v440, 0.0
      %v634 = vmax.f32 %v505, 0.0
      %v635 = vmax.f32 %v570, 0.0
      %v636 = vld [vmem:[%s3] sm:$0xff]
      %v637 = vld [vmem:[%s3 + $0x8] sm:$0xff]
      %v638 = vld [vmem:[%s3 + $0x10] sm:$0xff]
      %v639 = vld [vmem:[%s3 + $0x18] sm:$0xff]
      %v640 = vld [vmem:[%s3 + $0x20] sm:$0xff]
      %v641 = vld [vmem:[%s3 + $0x28] sm:$0xff]
      %v642 = vld [vmem:[%s3 + $0x30] sm:$0xff]
      %v643 = vld [vmem:[%s3 + $0x38] sm:$0xff]
      %v644 = vld [vmem:[%s3 + $0x40] sm:$0xff]
      %v645 = vld [vmem:[%s3 + $0x48] sm:$0xff]
      %v646 = vld [vmem:[%s3 + $0x50] sm:$0xff]
      %v647 = vld [vmem:[%s3 + $0x58] sm:$0xff]
      %v648 = vld [vmem:[%s3 + $0x60] sm:$0xff]
      %v649 = vld [vmem:[%s3 + $0x68] sm:$0xff]
      %v650 = vld [vmem:[%s3 + $0x70] sm:$0xff]
      %v651 = vld [vmem:[%s3 + $0x78] sm:$0xff]
      %v652 = vld [vmem:[%s3 + $0x80] sm:$0xff]
      %v653 = vld [vmem:[%s3 + $0x88] sm:$0xff]
      %v654 = vld [vmem:[%s3 + $0x90] sm:$0xff]
      %v655 = vld [vmem:[%s3 + $0x98] sm:$0xff]
      %v656 = vld [vmem:[%s3 + $0xa0] sm:$0xff]
      %v657 = vld [vmem:[%s3 + $0xa8] sm:$0xff]
      %v658 = vld [vmem:[%s3 + $0xb0] sm:$0xff]
      %v659 = vld [vmem:[%s3 + $0xb8] sm:$0xff]
      %v660 = vld [vmem:[%s3 + $0xc0] sm:$0xff]
      %v661 = vld [vmem:[%s3 + $0xc8] sm:$0xff]
      %v662 = vld [vmem:[%s3 + $0xd0] sm:$0xff]
      %v663 = vld [vmem:[%s3 + $0xd8] sm:$0xff]
      %v664 = vld [vmem:[%s3 + $0xe0] sm:$0xff]
      %v665 = vld [vmem:[%s3 + $0xe8] sm:$0xff]
      %v666 = vld [vmem:[%s3 + $0xf0] sm:$0xff]
      %v667 = vld [vmem:[%s3 + $0xf8] sm:$0xff]
      %v668 = vld [vmem:[%s3 + $0x100] sm:$0xff]
      %v669 = vld [vmem:[%s3 + $0x108] sm:$0xff]
      %v670 = vld [vmem:[%s3 + $0x110] sm:$0xff]
      %v671 = vld [vmem:[%s3 + $0x118] sm:$0xff]
      %v672 = vld [vmem:[%s3 + $0x120] sm:$0xff]
      %v673 = vld [vmem:[%s3 + $0x128] sm:$0xff]
      %v674 = vld [vmem:[%s3 + $0x130] sm:$0xff]
      %v675 = vld [vmem:[%s3 + $0x138] sm:$0xff]
      %v676 = vld [vmem:[%s3 + $0x140] sm:$0xff]
      %v677 = vld [vmem:[%s3 + $0x148] sm:$0xff]
      %v678 = vld [vmem:[%s3 + $0x150] sm:$0xff]
      %v679 = vld [vmem:[%s3 + $0x158] sm:$0xff]
      %v680 = vld [vmem:[%s3 + $0x160] sm:$0xff]
      %v681 = vld [vmem:[%s3 + $0x168] sm:$0xff]
      %v682 = vld [vmem:[%s3 + $0x170] sm:$0xff]
      %v683 = vld [vmem:[%s3 + $0x178] sm:$0xff]
      %v684 = vld [vmem:[%s3 + $0x180] sm:$0xff]
      %v685 = vld [vmem:[%s3 + $0x188] sm:$0xff]
      %v686 = vld [vmem:[%s3 + $0x190] sm:$0xff]
      %v687 = vld [vmem:[%s3 + $0x198] sm:$0xff]
      %v688 = vld [vmem:[%s3 + $0x1a0] sm:$0xff]
      %v689 = vld [vmem:[%s3 + $0x1a8] sm:$0xff]
      %v690 = vld [vmem:[%s3 + $0x1b0] sm:$0xff]
      %v691 = vld [vmem:[%s3 + $0x1b8] sm:$0xff]
      %v692 = vld [vmem:[%s3 + $0x1c0] sm:$0xff]
      %v693 = vld [vmem:[%s3 + $0x1c8] sm:$0xff]
      %v694 = vld [vmem:[%s3 + $0x1d0] sm:$0xff]
      %v695 = vld [vmem:[%s3 + $0x1d8] sm:$0xff]
      %v696 = vld [vmem:[%s3 + $0x1e0] sm:$0xff]
      %v697 = vld [vmem:[%s3 + $0x1e8] sm:$0xff]
      %v698 = vld [vmem:[%s3 + $0x1f0] sm:$0xff]
      %v699 = vld [vmem:[%s3 + $0x1f8] sm:$0xff]
      %s700 = sld [smem:[#allocation2]]
      %v701 = vstv %s700
      %702 = vmatpush.msra.mxu0 %v651
      %703 = vmatpush.msra.mxu0 %v650
      %704 = vmatpush.msra.mxu0 %v649
      %705 = vmatpush.msra.mxu0 %v648
      %706 = vmatpush.msra.mxu0 %v647
      %707 = vmatpush.msra.mxu0 %v646
      %708 = vmatpush.msra.mxu0 %v645
      %709 = vmatpush.msra.mxu0 %v644
      %710 = vmatpush.msra.mxu0 %v643
      %711 = vmatpush.msra.mxu0 %v642
      %712 = vmatpush.msra.mxu0 %v641
      %713 = vmatpush.msra.mxu0 %v640
      %714 = vmatpush.msra.mxu0 %v639
      %715 = vmatpush.msra.mxu0 %v638
      %716 = vmatpush.msra.mxu0 %v637
      %717 = vmatpush.msra.mxu0 %v636
      %718 = vmatmul.f32.gmra.mxu0 %v572
      %v719 = vpop.f32.mrf.mxu0
      %v720 = vadd.f32 %v701, %v719
      %721 = vmatmul.f32.gmra.mxu0 %v576
      %v722 = vpop.f32.mrf.mxu0
      %v723 = vadd.f32 %v701, %v722
      %724 = vmatmul.f32.gmra.mxu0 %v580
      %v725 = vpop.f32.mrf.mxu0
      %v726 = vadd.f32 %v701, %v725
      %727 = vmatmul.f32.gmra.mxu0 %v584
      %v728 = vpop.f32.mrf.mxu0
      %v729 = vadd.f32 %v701, %v728
      %730 = vmatmul.f32.gmra.mxu0 %v588
      %v731 = vpop.f32.mrf.mxu0
      %v732 = vadd.f32 %v701, %v731
      %733 = vmatmul.f32.gmra.mxu0 %v592
      %v734 = vpop.f32.mrf.mxu0
      %v735 = vadd.f32 %v701, %v734
      %736 = vmatmul.f32.gmra.mxu0 %v596
      %v737 = vpop.f32.mrf.mxu0
      %v738 = vadd.f32 %v701, %v737
      %739 = vmatmul.f32.gmra.mxu0 %v600
      %v740 = vpop.f32.mrf.mxu0
      %v741 = vadd.f32 %v701, %v740
      %742 = vmatmul.f32.gmra.mxu0 %v604
      %v743 = vpop.f32.mrf.mxu0
      %v744 = vadd.f32 %v701, %v743
      %745 = vmatmul.f32.gmra.mxu0 %v608
      %v746 = vpop.f32.mrf.mxu0
      %v747 = vadd.f32 %v701, %v746
      %748 = vmatmul.f32.gmra.mxu0 %v612
      %v749 = vpop.f32.mrf.mxu0
      %v750 = vadd.f32 %v701, %v749
      %751 = vmatmul.f32.gmra.mxu0 %v616
      %v752 = vpop.f32.mrf.mxu0
      %v753 = vadd.f32 %v701, %v752
      %754 = vmatmul.f32.gmra.mxu0 %v620
      %v755 = vpop.f32.mrf.mxu0
      %v756 = vadd.f32 %v701, %v755
      %757 = vmatmul.f32.gmra.mxu0 %v624
      %v758 = vpop.f32.mrf.mxu0
      %v759 = vadd.f32 %v701, %v758
      %760 = vmatmul.f32.gmra.mxu0 %v628
      %v761 = vpop.f32.mrf.mxu0
      %v762 = vadd.f32 %v701, %v761
      %763 = vmatmul.f32.gmra.mxu0 %v632
      %v764 = vpop.f32.mrf.mxu0
      %v765 = vadd.f32 %v701, %v764
      %766 = vdwg.mxu0
      %767 = vmatpush.msra.mxu0 %v667
      %768 = vmatpush.msra.mxu0 %v666
      %769 = vmatpush.msra.mxu0 %v665
      %770 = vmatpush.msra.mxu0 %v664
      %771 = vmatpush.msra.mxu0 %v663
      %772 = vmatpush.msra.mxu0 %v662
      %773 = vmatpush.msra.mxu0 %v661
      %774 = vmatpush.msra.mxu0 %v660
      %775 = vmatpush.msra.mxu0 %v659
      %776 = vmatpush.msra.mxu0 %v658
      %777 = vmatpush.msra.mxu0 %v657
      %778 = vmatpush.msra.mxu0 %v656
      %779 = vmatpush.msra.mxu0 %v655
      %780 = vmatpush.msra.mxu0 %v654
      %781 = vmatpush.msra.mxu0 %v653
      %782 = vmatpush.msra.mxu0 %v652
      %783 = vmatmul.f32.gmra.mxu0 %v573
      %v784 = vpop.f32.mrf.mxu0
      %v785 = vadd.f32 %v720, %v784
      %786 = vmatmul.f32.gmra.mxu0 %v577
      %v787 = vpop.f32.mrf.mxu0
      %v788 = vadd.f32 %v723, %v787
      %789 = vmatmul.f32.gmra.mxu0 %v581
      %v790 = vpop.f32.mrf.mxu0
      %v791 = vadd.f32 %v726, %v790
      %792 = vmatmul.f32.gmra.mxu0 %v585
      %v793 = vpop.f32.mrf.mxu0
      %v794 = vadd.f32 %v729, %v793
      %795 = vmatmul.f32.gmra.mxu0 %v589
      %v796 = vpop.f32.mrf.mxu0
      %v797 = vadd.f32 %v732, %v796
      %798 = vmatmul.f32.gmra.mxu0 %v593
      %v799 = vpop.f32.mrf.mxu0
      %v800 = vadd.f32 %v735, %v799
      %801 = vmatmul.f32.gmra.mxu0 %v597
      %v802 = vpop.f32.mrf.mxu0
      %v803 = vadd.f32 %v738, %v802
      %804 = vmatmul.f32.gmra.mxu0 %v601
      %v805 = vpop.f32.mrf.mxu0
      %v806 = vadd.f32 %v741, %v805
      %807 = vmatmul.f32.gmra.mxu0 %v605
      %v808 = vpop.f32.mrf.mxu0
      %v809 = vadd.f32 %v744, %v808
      %810 = vmatmul.f32.gmra.mxu0 %v609
      %v811 = vpop.f32.mrf.mxu0
      %v812 = vadd.f32 %v747, %v811
      %813 = vmatmul.f32.gmra.mxu0 %v613
      %v814 = vpop.f32.mrf.mxu0
      %v815 = vadd.f32 %v750, %v814
      %816 = vmatmul.f32.gmra.mxu0 %v617
      %v817 = vpop.f32.mrf.mxu0
      %v818 = vadd.f32 %v753, %v817
      %819 = vmatmul.f32.gmra.mxu0 %v621
      %v820 = vpop.f32.mrf.mxu0
      %v821 = vadd.f32 %v756, %v820
      %822 = vmatmul.f32.gmra.mxu0 %v625
      %v823 = vpop.f32.mrf.mxu0
      %v824 = vadd.f32 %v759, %v823
      %825 = vmatmul.f32.gmra.mxu0 %v629
      %v826 = vpop.f32.mrf.mxu0
      %v827 = vadd.f32 %v762, %v826
      %828 = vmatmul.f32.gmra.mxu0 %v633
      %v829 = vpop.f32.mrf.mxu0
      %v830 = vadd.f32 %v765, %v829
      %831 = vdwg.mxu0
      %832 = vmatpush.msra.mxu0 %v683
      %833 = vmatpush.msra.mxu0 %v682
      %834 = vmatpush.msra.mxu0 %v681
      %835 = vmatpush.msra.mxu0 %v680
      %836 = vmatpush.msra.mxu0 %v679
      %837 = vmatpush.msra.mxu0 %v678
      %838 = vmatpush.msra.mxu0 %v677
      %839 = vmatpush.msra.mxu0 %v676
      %840 = vmatpush.msra.mxu0 %v675
      %841 = vmatpush.msra.mxu0 %v674
      %842 = vmatpush.msra.mxu0 %v673
      %843 = vmatpush.msra.mxu0 %v672
      %844 = vmatpush.msra.mxu0 %v671
      %845 = vmatpush.msra.mxu0 %v670
      %846 = vmatpush.msra.mxu0 %v669
      %847 = vmatpush.msra.mxu0 %v668
      %848 = vmatmul.f32.gmra.mxu0 %v574
      %v849 = vpop.f32.mrf.mxu0
      %v850 = vadd.f32 %v785, %v849
      %851 = vmatmul.f32.gmra.mxu0 %v578
      %v852 = vpop.f32.mrf.mxu0
      %v853 = vadd.f32 %v788, %v852
      %854 = vmatmul.f32.gmra.mxu0 %v582
      %v855 = vpop.f32.mrf.mxu0
      %v856 = vadd.f32 %v791, %v855
      %857 = vmatmul.f32.gmra.mxu0 %v586
      %v858 = vpop.f32.mrf.mxu0
      %v859 = vadd.f32 %v794, %v858
      %860 = vmatmul.f32.gmra.mxu0 %v590
      %v861 = vpop.f32.mrf.mxu0
      %v862 = vadd.f32 %v797, %v861
      %863 = vmatmul.f32.gmra.mxu0 %v594
      %v864 = vpop.f32.mrf.mxu0
      %v865 = vadd.f32 %v800, %v864
      %866 = vmatmul.f32.gmra.mxu0 %v598
      %v867 = vpop.f32.mrf.mxu0
      %v868 = vadd.f32 %v803, %v867
      %869 = vmatmul.f32.gmra.mxu0 %v602
      %v870 = vpop.f32.mrf.mxu0
      %v871 = vadd.f32 %v806, %v870
      %872 = vmatmul.f32.gmra.mxu0 %v606
      %v873 = vpop.f32.mrf.mxu0
      %v874 = vadd.f32 %v809, %v873
      %875 = vmatmul.f32.gmra.mxu0 %v610
      %v876 = vpop.f32.mrf.mxu0
      %v877 = vadd.f32 %v812, %v876
      %878 = vmatmul.f32.gmra.mxu0 %v614
      %v879 = vpop.f32.mrf.mxu0
      %v880 = vadd.f32 %v815, %v879
      %881 = vmatmul.f32.gmra.mxu0 %v618
      %v882 = vpop.f32.mrf.mxu0
      %v883 = vadd.f32 %v818, %v882
      %884 = vmatmul.f32.gmra.mxu0 %v622
      %v885 = vpop.f32.mrf.mxu0
      %v886 = vadd.f32 %v821, %v885
      %887 = vmatmul.f32.gmra.mxu0 %v626
      %v888 = vpop.f32.mrf.mxu0
      %v889 = vadd.f32 %v824, %v888
      %890 = vmatmul.f32.gmra.mxu0 %v630
      %v891 = vpop.f32.mrf.mxu0
      %v892 = vadd.f32 %v827, %v891
      %893 = vmatmul.f32.gmra.mxu0 %v634
      %v894 = vpop.f32.mrf.mxu0
      %v895 = vadd.f32 %v830, %v894
      %896 = vdwg.mxu0
      %897 = vmatpush.msra.mxu0 %v699
      %898 = vmatpush.msra.mxu0 %v698
      %899 = vmatpush.msra.mxu0 %v697
      %900 = vmatpush.msra.mxu0 %v696
      %901 = vmatpush.msra.mxu0 %v695
      %902 = vmatpush.msra.mxu0 %v694
      %903 = vmatpush.msra.mxu0 %v693
      %904 = vmatpush.msra.mxu0 %v692
      %905 = vmatpush.msra.mxu0 %v691
      %906 = vmatpush.msra.mxu0 %v690
      %907 = vmatpush.msra.mxu0 %v689
      %908 = vmatpush.msra.mxu0 %v688
      %909 = vmatpush.msra.mxu0 %v687
      %910 = vmatpush.msra.mxu0 %v686
      %911 = vmatpush.msra.mxu0 %v685
      %912 = vmatpush.msra.mxu0 %v684
      %913 = vmatmul.f32.gmra.mxu0 %v575
      %v914 = vpop.f32.mrf.mxu0
      %v915 = vadd.f32 %v850, %v914
      %916 = vmatmul.f32.gmra.mxu0 %v579
      %v917 = vpop.f32.mrf.mxu0
      %v918 = vadd.f32 %v853, %v917
      %919 = vmatmul.f32.gmra.mxu0 %v583
      %v920 = vpop.f32.mrf.mxu0
      %v921 = vadd.f32 %v856, %v920
      %922 = vmatmul.f32.gmra.mxu0 %v587
      %v923 = vpop.f32.mrf.mxu0
      %v924 = vadd.f32 %v859, %v923
      %925 = vmatmul.f32.gmra.mxu0 %v591
      %v926 = vpop.f32.mrf.mxu0
      %v927 = vadd.f32 %v862, %v926
      %928 = vmatmul.f32.gmra.mxu0 %v595
      %v929 = vpop.f32.mrf.mxu0
      %v930 = vadd.f32 %v865, %v929
      %931 = vmatmul.f32.gmra.mxu0 %v599
      %v932 = vpop.f32.mrf.mxu0
      %v933 = vadd.f32 %v868, %v932
      %934 = vmatmul.f32.gmra.mxu0 %v603
      %v935 = vpop.f32.mrf.mxu0
      %v936 = vadd.f32 %v871, %v935
      %937 = vmatmul.f32.gmra.mxu0 %v607
      %v938 = vpop.f32.mrf.mxu0
      %v939 = vadd.f32 %v874, %v938
      %940 = vmatmul.f32.gmra.mxu0 %v611
      %v941 = vpop.f32.mrf.mxu0
      %v942 = vadd.f32 %v877, %v941
      %943 = vmatmul.f32.gmra.mxu0 %v615
      %v944 = vpop.f32.mrf.mxu0
      %v945 = vadd.f32 %v880, %v944
      %946 = vmatmul.f32.gmra.mxu0 %v619
      %v947 = vpop.f32.mrf.mxu0
      %v948 = vadd.f32 %v883, %v947
      %949 = vmatmul.f32.gmra.mxu0 %v623
      %v950 = vpop.f32.mrf.mxu0
      %v951 = vadd.f32 %v886, %v950
      %952 = vmatmul.f32.gmra.mxu0 %v627
      %v953 = vpop.f32.mrf.mxu0
      %v954 = vadd.f32 %v889, %v953
      %955 = vmatmul.f32.gmra.mxu0 %v631
      %v956 = vpop.f32.mrf.mxu0
      %v957 = vadd.f32 %v892, %v956
      %958 = vmatmul.f32.gmra.mxu0 %v635
      %v959 = vpop.f32.mrf.mxu0
      %v960 = vadd.f32 %v895, %v959
      %961 = vdwg.mxu0
      %vm962 = vcmask 7168
      %963 = vst.msk [vmem:[%s227] sm:$0xff] %vm962, %v915
      %964 = vst.msk [vmem:[%s227 + $0x8] sm:$0xff] %vm962, %v918
      %965 = vst.msk [vmem:[%s227 + $0x10] sm:$0xff] %vm962, %v921
      %966 = vst.msk [vmem:[%s227 + $0x18] sm:$0xff] %vm962, %v924
      %967 = vst.msk [vmem:[%s227 + $0x20] sm:$0xff] %vm962, %v927
      %968 = vst.msk [vmem:[%s227 + $0x28] sm:$0xff] %vm962, %v930
      %969 = vst.msk [vmem:[%s227 + $0x30] sm:$0xff] %vm962, %v933
      %970 = vst.msk [vmem:[%s227 + $0x38] sm:$0xff] %vm962, %v936
      %971 = vst.msk [vmem:[%s227 + $0x40] sm:$0xff] %vm962, %v939
      %972 = vst.msk [vmem:[%s227 + $0x48] sm:$0xff] %vm962, %v942
      %973 = vst.msk [vmem:[%s227 + $0x50] sm:$0xff] %vm962, %v945
      %974 = vst.msk [vmem:[%s227 + $0x58] sm:$0xff] %vm962, %v948
      %975 = vst.msk [vmem:[%s227 + $0x60] sm:$0xff] %vm962, %v951
      %976 = vst.msk [vmem:[%s227 + $0x68] sm:$0xff] %vm962, %v954
      %977 = vst.msk [vmem:[%s227 + $0x70] sm:$0xff] %vm962, %v957
      %978 = vst.msk [vmem:[%s227 + $0x78] sm:$0xff] %vm962, %v960
      %s979 = smul.u32 16, %s17
      %p980 = scmp.lt.s32.totalorder %s979, 31
      %s981 = scalar_select %p980, %s979, 31
      %s982 = smul.addr %s981, 8
      %s983 = scalar_lea.vmem %s5, %s982
      // Predicated region
      $region41: #{tpu_custom_call.1} parent=39 // pred_check
        %p984 = pneg %p145
      $region42: #{tpu_custom_call.1} parent=39 // pred_check_branch
        %986 = sbr.rel (%p984) target = $region44
      $region43: #{tpu_custom_call.1} parent=39 // pred_region
        %s987 = smul.u32 16, %s17
      $region44: #{tpu_custom_call.1} parent=39 // pred_fallthru
        _
    $region40: #{tpu_custom_call.1} parent=5 // pred_fallthru
      _
    %p988 = scmp.le.s32.totalorder 2, %s12
    // Predicated region
    $region45: #{tpu_custom_call.1} parent=5 // pred_check
      %p989 = pneg %p988
    $region46: #{tpu_custom_call.1} parent=5 // pred_check_branch
      %991 = sbr.rel (%p989) target = $region48
    $region47: #{tpu_custom_call.1} parent=5 // pred_region
      %s992 = ssub.s32 %s12, 2
      // Predicated region
      $region49: #{tpu_custom_call.1} parent=47 // pred_check
        %p993 = pneg %p151
      $region50: #{tpu_custom_call.1} parent=47 // pred_check_branch
        %995 = sbr.rel (%p993) target = $region52
      $region51: #{tpu_custom_call.1} parent=47 // pred_region
        %s996 = smul.u32 16, %s18
        %p997 = scmp.lt.s32.totalorder %s996, 31
        %s998 = scalar_select %p997, %s996, 31
        %s999 = smul.addr %s998, 8
        %s1000 = scalar_lea.vmem %s5, %s999
      $region52: #{tpu_custom_call.1} parent=47 // pred_fallthru
        _
    $region48: #{tpu_custom_call.1} parent=5 // pred_fallthru
      _
  $region6: #{tpu_custom_call.1} parent=0 // loop_footer
    %s16 = sadd.s32 1, %s12
  $region7: #{tpu_custom_call.1} parent=0 // loop_footer_branch
    %11 = sbr.rel target = $region3
  $region8: #{tpu_custom_call.1} parent=0 // loop_exit
    _

</llo_original>
